<compile_context>
chip_gen: v7x
topology: tpu7x:2x2x1
jax: 0.10.0
libtpu: 0.0.40
codegen_flags: <defaults>
</compile_context>

<pallas_src>
import jax
import jax.numpy as jnp
from jax.experimental import pallas as pl
from jax.experimental.pallas import tpu as pltpu

_SPLIT_THRESHOLD_BYTES = 2 * 1024 * 1024  # only chunk the DMA for >= 2 MiB


# ---------------------------------------------------------------------------
# Materializing copy path: direct HBM -> HBM DMA (no VMEM round trip).
# ---------------------------------------------------------------------------
def _identity_copy(x):
    shape = x.shape
    dtype = x.dtype
    itemsize = jnp.dtype(dtype).itemsize
    total_bytes = int(x.size) * itemsize

    # Static split plan along the leading dim: two chunked DMAs issued
    # back-to-back for large arrays, one descriptor otherwise.
    if x.ndim >= 1 and shape[0] >= 2 and total_bytes >= _SPLIT_THRESHOLD_BYTES:
        half = shape[0] // 2
        splits = ((0, half), (half, shape[0] - half))
    else:
        splits = None
    n_sems = 1 if splits is None else len(splits)

    def kernel(x_hbm, o_hbm, sems):
        if splits is None:
            cp = pltpu.make_async_copy(x_hbm, o_hbm, sems.at[0])
            cp.start()
            cp.wait()
        else:
            copies = []
            for idx, (start, size) in enumerate(splits):
                cp = pltpu.make_async_copy(
                    x_hbm.at[pl.ds(start, size)],
                    o_hbm.at[pl.ds(start, size)],
                    sems.at[idx],
                )
                cp.start()  # issue all DMAs first ...
                copies.append(cp)
            for cp in copies:  # ... then wait on all of them
                cp.wait()

    return pl.pallas_call(
        kernel,
        out_shape=jax.ShapeDtypeStruct(shape, dtype),
        in_specs=[pl.BlockSpec(memory_space=pl.ANY)],
        out_specs=pl.BlockSpec(memory_space=pl.ANY),
        scratch_shapes=[pltpu.SemaphoreType.DMA((n_sems,))],
        cost_estimate=pl.CostEstimate(
            flops=0,
            transcendentals=0,
            bytes_accessed=2 * total_bytes,  # read once + write once
        ),
    )(x)


# ---------------------------------------------------------------------------
# Public wrapper (matches IdentityFeat.forward semantics).
# ---------------------------------------------------------------------------
def identity_feat(x, *, last_dim=None, copy=False):
    """Pallas implementation of IdentityFeat.forward (returns x unchanged).

    `last_dim` is carried only for API parity with the PyTorch module.

    copy=False (default): return x directly.  This is the optimal identity —
        zero bytes moved, zero kernel launches.  (An aliased no-op kernel
        would only help if the caller donates x under jit; otherwise XLA
        inserts a protective full copy, which defeats the purpose.)
    copy=True: produce a distinct output buffer via a single HBM->HBM DMA
        Pallas kernel (no VMEM staging, no tiling constraints).
    """
    del last_dim  # metadata only; does not affect the forward pass
    if copy:
        return _identity_copy(x)
    return x


if __name__ == "__main__":
    key = jax.random.PRNGKey(0)
    # NCHW input, consistent with a conv-style feature-extractor interface.
    x = jax.random.normal(key, (2, 4, 16, 16), dtype=jnp.float32)

    # Default path: exact module semantics (return x).
    y = identity_feat(x, last_dim=4)
    y = jax.block_until_ready(y)
    assert y.shape == x.shape and y.dtype == x.dtype
    assert bool(jnp.all(y == x))

    # Kernel path: distinct output buffer via direct HBM->HBM DMA.
    y2 = identity_feat(x, last_dim=4, copy=True)
    y2 = jax.block_until_ready(y2)
    assert y2.shape == x.shape and y2.dtype == x.dtype
    assert bool(jnp.all(y2 == x))

    # Also exercise the chunked-DMA plan on a larger input (>= 2 MiB).
    xb = jax.random.normal(key, (8, 64, 32, 32), dtype=jnp.float32)
    yb = jax.block_until_ready(identity_feat(xb, last_dim=64, copy=True))
    assert bool(jnp.all(yb == xb))

    print("KERNEL_OK")
</pallas_src>

<mosaic_0001>
module attributes {stable_mosaic.version = 11 : i64} {
  func.func @kernel(%arg0: memref<2x4x16x16xf32, #tpu.memory_space<any>>, %arg1: memref<2x4x16x16xf32, #tpu.memory_space<any>>, %arg2: memref<1x!tpu.dma_semaphore, #tpu.memory_space<semaphore_mem>>) attributes {dimension_semantics = [], scalar_prefetch = 0 : i64, scratch_operands = 1 : i64, tpu.core_type = #tpu.core_type<tc>} {
    %c0_i32 = arith.constant 0 : i32
    %0 = tpu.memref_slice %arg2[%c0_i32] : memref<1x!tpu.dma_semaphore, #tpu.memory_space<semaphore_mem>> -> memref<1x!tpu.dma_semaphore, #tpu.memory_space<semaphore_mem>>
    %1 = tpu.memref_squeeze %0 : memref<1x!tpu.dma_semaphore, #tpu.memory_space<semaphore_mem>> -> memref<!tpu.dma_semaphore, #tpu.memory_space<semaphore_mem>>
    tpu.enqueue_dma source(%arg0 : memref<2x4x16x16xf32, #tpu.memory_space<any>>) target(%arg1 : memref<2x4x16x16xf32, #tpu.memory_space<any>>) target_semaphore(%1 : memref<!tpu.dma_semaphore, #tpu.memory_space<semaphore_mem>>)
    %c0_i32_0 = arith.constant 0 : i32
    %2 = tpu.memref_slice %arg2[%c0_i32_0] : memref<1x!tpu.dma_semaphore, #tpu.memory_space<semaphore_mem>> -> memref<1x!tpu.dma_semaphore, #tpu.memory_space<semaphore_mem>>
    %3 = tpu.memref_squeeze %2 : memref<1x!tpu.dma_semaphore, #tpu.memory_space<semaphore_mem>> -> memref<!tpu.dma_semaphore, #tpu.memory_space<semaphore_mem>>
    tpu.wait_dma2 semaphore(%3 : memref<!tpu.dma_semaphore, #tpu.memory_space<semaphore_mem>>) src(%arg0 : memref<2x4x16x16xf32, #tpu.memory_space<any>>) dst(%arg1 : memref<2x4x16x16xf32, #tpu.memory_space<any>>)
    return
  }
}

</mosaic_0001>

<llo_original>
// kernel: tpu_custom_call.1
$region0: #{tpu_custom_call.1}
  #allocation0 [shape = 'u32[]', space=smem, size = 0x4, offset = 0x4, fixed_abs, tag = 'smem constant byte address 0x4 - core index']
  #allocation1 [shape = 'u32[144,128]{1,0:T(1,128)}', space=vmem, size = 0x12000, scoped, tag = 'internal scratch']
  #allocation2 [shape = 's32[1]{0}', space=sflag, size = 0x4, scoped, tag = 'scratch operand']
  #allocation3 [shape = 's32[]', space=sflag, size = 0x4, offset = 0, fixed_abs, tag = 'sflag constant byte address 0x0 - dummy sync flag']
  #allocation4 [shape = 'u32[0]{0}', space=smem, size = 0, offset = 0, fixed_abs, tag = 'smem constant byte address 0x0 - null']
  %s0 = inlined_call_operand.hbm [shape: f32[2,4,16,16], index: 0, kind: input, shape index: {}]
  %s1 = inlined_call_operand.hbm [shape: f32[2,4,16,16], index: 1, kind: output, shape index: {}]
  %s2 = sld [smem:[#allocation0]]
  $region2: #{tpu_custom_call.1} parent=0
    _
  %s4 = ssub.s32 1, %s2
  %s5 = scalar_select 0, %s4, %s2
  %s7 = sshll.u32 1, 14
  %s8 = sxor.u32 4294967295, %s7
  %s11 = sshll.u32 3, 24
  %s12 = sxor.u32 4294967295, %s11
  %s13 = sand.u32 0, %s12
  %s15 = sor.u32 %s13, 0
  %18 = dma.general %s0, 2048, %s1, [#allocation2], [#allocation3], [#allocation4], %s15, 0
  %s19 = smul.u32 2, 4
  %s20 = smul.u32 %s19, 16
  %s21 = smul.u32 %s20, 1
  %s22 = sshll.u32 %s21, 4
  %23 = dma.done [#allocation2], %s22
  %24 = vsyncmov [#allocation2]
  %s25 = vpop.sfrf %24
  %p26 = scmp.eq.s32.totalorder %s25, 0
  %p27 = pneg %p26
  %29 = shalt.err (%p27)

</llo_original>
